<compile_context>
chip_gen: v7x
topology: tpu7x:2x2x1
jax: 0.10.0
libtpu: 0.0.40
codegen_flags: <defaults>
</compile_context>

<pallas_src>
import functools
import math

import jax
import jax.numpy as jnp
from jax.experimental import pallas as pl
from jax.experimental.pallas import tpu as pltpu


def _round_up(a, b):
    return (a + b - 1) // b * b


# ----------------------------------------------------------------------------
# Kernel: grid = (row_tiles, lane_tiles); lane (reduction) axis innermost.
# ----------------------------------------------------------------------------
def _dice_kernel(x_ref, y_ref, dc_ref, sxy_ref, sxpy_ref, *,
                 smooth, n_rows, n_cols, tr, tl, mask_lanes, mask_rows):
    r = pl.program_id(0)
    l = pl.program_id(1)
    nl = pl.num_programs(1)

    # Zero the per-row-tile accumulators at the start of each reduction.
    @pl.when(l == 0)
    def _():
        sxy_ref[...] = jnp.zeros_like(sxy_ref)
        sxpy_ref[...] = jnp.zeros_like(sxpy_ref)

    # Convert-on-load; accumulation stays f32.
    x = x_ref[...].astype(jnp.float32)
    y = y_ref[...].astype(jnp.float32)

    if mask_lanes:
        # Out-of-bounds lane columns of the (ragged) last tile hold garbage:
        # select 0.0 there (jnp.where is a select, so NaN garbage is harmless).
        col = jax.lax.broadcasted_iota(jnp.int32, (tr, tl), 1) + l * tl
        valid = col < n_cols
        x = jnp.where(valid, x, 0.0)
        y = jnp.where(valid, y, 0.0)

    xy = x * y          # numerator term
    xpy = x + y         # denominator term: sum(x) + sum(y) == sum(x + y)

    def fold(v):
        # (tr, tl) -> (tr, 128): fold lane columns with VALU adds only
        # (static, vreg-aligned slices; no cross-lane XLU work per step).
        acc = v[:, 0:128]
        for c in range(1, tl // 128):
            acc = acc + v[:, c * 128:(c + 1) * 128]
        return acc

    sxy_ref[...] += fold(xy)
    sxpy_ref[...] += fold(xpy)

    # End of this row tile's reduction: one cross-lane reduce + Dice coeff.
    @pl.when(l == nl - 1)
    def _():
        s_xy = jnp.sum(sxy_ref[...], axis=-1, keepdims=True)    # (tr, 1)
        s_xpy = jnp.sum(sxpy_ref[...], axis=-1, keepdims=True)  # (tr, 1)
        dc = (2.0 * s_xy + smooth) / (s_xpy + smooth)
        if mask_rows:
            rows = jax.lax.broadcasted_iota(jnp.int32, dc.shape, 0) + r * tr
            dc = jnp.where(rows < n_rows, dc, 0.0)
        dc_ref[...] = dc


# ----------------------------------------------------------------------------
# Wrapper: flatten (keep dims, reduce dims) -> (R, L); no pad, no astype.
# ----------------------------------------------------------------------------
def dice_loss(x, y, *, smooth=1.0, dims=(-2, -1), tr_max=256, tl_max=4096,
              block_budget_bytes=2 * 1024 * 1024):
    assert x.shape == y.shape, (x.shape, y.shape)
    nd = x.ndim
    red = tuple(sorted(d % nd for d in dims))
    keep = tuple(d for d in range(nd) if d not in red)
    perm = keep + red  # identity (free) for the default dims=(-2, -1)

    R = math.prod(x.shape[d] for d in keep) if keep else 1
    L = math.prod(x.shape[d] for d in red) if red else 1

    # Layout plumbing only; keeps the caller's dtype (bf16 passes straight
    # through and is upcast inside the kernel).
    x2 = jnp.reshape(jnp.transpose(x, perm), (R, L))
    y2 = jnp.reshape(jnp.transpose(y, perm), (R, L))

    itemsize = max(x2.dtype.itemsize, y2.dtype.itemsize)
    # Lane tile: whole 128-rounded reduction axis when allowed (lane grid = 1
    # for typical H*W); fall back to tiling only for very large L.
    tl = min(_round_up(L, 128), _round_up(tl_max, 128))
    # Row tile: as large as the per-block VMEM budget allows.
    tr_cap = max(8, (block_budget_bytes // (tl * itemsize)) // 8 * 8)
    tr = min(_round_up(R, 8), tr_cap, _round_up(tr_max, 8))

    grid = (pl.cdiv(R, tr), pl.cdiv(L, tl))
    r_pad = grid[0] * tr

    kernel = functools.partial(
        _dice_kernel, smooth=float(smooth), n_rows=R, n_cols=L, tr=tr, tl=tl,
        mask_lanes=(L % tl != 0), mask_rows=(R % tr != 0))

    dc = pl.pallas_call(
        kernel,
        out_shape=jax.ShapeDtypeStruct((r_pad, 1), jnp.float32),
        grid_spec=pltpu.PrefetchScalarGridSpec(
            num_scalar_prefetch=0,
            grid=grid,
            in_specs=[
                pl.BlockSpec((tr, tl), lambda r, l: (r, l)),
                pl.BlockSpec((tr, tl), lambda r, l: (r, l)),
            ],
            out_specs=pl.BlockSpec((tr, 1), lambda r, l: (r, 0)),
            scratch_shapes=[
                pltpu.VMEM((tr, 128), jnp.float32),   # sum(x*y) lane partials
                pltpu.VMEM((tr, 128), jnp.float32),   # sum(x+y) lane partials
            ],
        ),
        compiler_params=pltpu.CompilerParams(
            dimension_semantics=("parallel", "arbitrary")),
    )(x2, y2)

    # Tiny epilogue in plain JAX: mean over the R valid (batch*class) rows.
    return 1.0 - jnp.mean(dc[:R, 0])


class DiceLoss:
    """Pallas-backed drop-in for the PyTorch DiceLoss module."""

    def __init__(self, smooth=1.0, dims=(-2, -1)):
        self.smooth = smooth
        self.dims = dims

    def __call__(self, x, y):
        return dice_loss(x, y, smooth=self.smooth, dims=self.dims)


def _ref_loss(x, y, smooth=1.0, dims=(-2, -1)):
    """Pure-JAX reference of the PyTorch forward."""
    x = x.astype(jnp.float32)
    y = y.astype(jnp.float32)
    tp = (x * y).sum(dims)
    fp = (x * (1.0 - y)).sum(dims)
    fn = ((1.0 - x) * y).sum(dims)
    dc = (2.0 * tp + smooth) / (2.0 * tp + fp + fn + smooth)
    return 1.0 - dc.mean()


if __name__ == "__main__":
    key = jax.random.PRNGKey(0)
    kx, ky, kx2, ky2 = jax.random.split(key, 4)

    loss_fn = DiceLoss(smooth=1.0, dims=(-2, -1))

    # 1) Typical NCHW case: x = predicted probabilities, y = 0/1 masks.
    x = jax.random.uniform(kx, (2, 4, 16, 16), jnp.float32)
    y = (jax.random.uniform(ky, (2, 4, 16, 16)) > 0.5).astype(jnp.float32)
    loss = jax.block_until_ready(loss_fn(x, y))
    ref = _ref_loss(x, y)
    assert loss.shape == (), loss.shape
    assert bool(jnp.isfinite(loss)), loss
    assert jnp.allclose(loss, ref, rtol=1e-5, atol=1e-6), (loss, ref)

    # 2) Ragged shapes (exercises the in-kernel row / lane masking path).
    xr = jax.random.uniform(kx2, (2, 3, 17, 19), jnp.float32)
    yr = (jax.random.uniform(ky2, (2, 3, 17, 19)) > 0.5).astype(jnp.float32)
    loss_r = jax.block_until_ready(loss_fn(xr, yr))
    ref_r = _ref_loss(xr, yr)
    assert jnp.allclose(loss_r, ref_r, rtol=1e-5, atol=1e-6), (loss_r, ref_r)

    # 3) bf16 mask input (exact for 0/1 masks; halves the HBM bytes for y).
    loss_b = jax.block_until_ready(loss_fn(x, y.astype(jnp.bfloat16)))
    assert jnp.allclose(loss_b, ref, rtol=1e-5, atol=1e-6), (loss_b, ref)

    print("KERNEL_OK")
</pallas_src>

<mosaic_0001>
module attributes {stable_mosaic.version = 11 : i64} {
  func.func @_dice_kernel(%arg0: i32, %arg1: i32, %arg2: memref<8x256xf32, #tpu.memory_space<vmem>>, %arg3: memref<8x256xf32, #tpu.memory_space<vmem>>, %arg4: memref<8x1xf32, #tpu.memory_space<vmem>>, %arg5: memref<8x128xf32, #tpu.memory_space<vmem>>, %arg6: memref<8x128xf32, #tpu.memory_space<vmem>>) attributes {dimension_semantics = [#tpu.dimension_semantics<parallel>, #tpu.dimension_semantics<arbitrary>], iteration_bounds = array<i64: 1, 1>, scalar_prefetch = 0 : i64, scratch_operands = 2 : i64, tpu.core_type = #tpu.core_type<tc>, window_params = [{transform_indices = @transform_0, window_bounds = array<i64: 8, 256>}, {transform_indices = @transform_1, window_bounds = array<i64: 8, 256>}, {transform_indices = @transform_2, window_bounds = array<i64: 8, 1>}]} {
    %c0_i32 = arith.constant 0 : i32
    %0 = arith.cmpi eq, %arg1, %c0_i32 : i32
    %1 = arith.extui %0 : i1 to i32
    %c0_i32_0 = arith.constant 0 : i32
    %2 = arith.cmpi ne, %1, %c0_i32_0 : i32
    scf.if %2 {
      %cst = arith.constant 0.000000e+00 : f32
      %22 = vector.broadcast %cst : f32 to vector<8x128xf32>
      %c0_14 = arith.constant 0 : index
      %c0_15 = arith.constant 0 : index
      %23 = vector.load %arg5[%c0_14, %c0_15] : memref<8x128xf32, #tpu.memory_space<vmem>>, vector<8x128xf32>
      tpu.vector_store %arg5[%c0_14, %c0_15], %22 {strides = array<i32>} : memref<8x128xf32, #tpu.memory_space<vmem>>, vector<8x128xf32>,
      %cst_16 = arith.constant 0.000000e+00 : f32
      %24 = vector.broadcast %cst_16 : f32 to vector<8x128xf32>
      %c0_17 = arith.constant 0 : index
      %c0_18 = arith.constant 0 : index
      %25 = vector.load %arg6[%c0_17, %c0_18] : memref<8x128xf32, #tpu.memory_space<vmem>>, vector<8x128xf32>
      tpu.vector_store %arg6[%c0_17, %c0_18], %24 {strides = array<i32>} : memref<8x128xf32, #tpu.memory_space<vmem>>, vector<8x128xf32>,
    } else {
    }
    %c0 = arith.constant 0 : index
    %c0_1 = arith.constant 0 : index
    %3 = vector.load %arg2[%c0, %c0_1] : memref<8x256xf32, #tpu.memory_space<vmem>>, vector<8x256xf32>
    %c0_2 = arith.constant 0 : index
    %c0_3 = arith.constant 0 : index
    %4 = vector.load %arg3[%c0_2, %c0_3] : memref<8x256xf32, #tpu.memory_space<vmem>>, vector<8x256xf32>
    %5 = arith.mulf %3, %4 : vector<8x256xf32>
    %6 = arith.addf %3, %4 : vector<8x256xf32>
    %c0_4 = arith.constant 0 : index
    %c0_5 = arith.constant 0 : index
    %7 = vector.load %arg5[%c0_4, %c0_5] : memref<8x128xf32, #tpu.memory_space<vmem>>, vector<8x128xf32>
    %8 = vector.extract_strided_slice %5 {offsets = [0, 0], sizes = [8, 128], strides = [1, 1]} : vector<8x256xf32> to vector<8x128xf32>
    %9 = vector.extract_strided_slice %5 {offsets = [0, 128], sizes = [8, 128], strides = [1, 1]} : vector<8x256xf32> to vector<8x128xf32>
    %10 = arith.addf %8, %9 : vector<8x128xf32>
    %11 = arith.addf %7, %10 : vector<8x128xf32>
    %c0_6 = arith.constant 0 : index
    %c0_7 = arith.constant 0 : index
    %12 = vector.load %arg5[%c0_6, %c0_7] : memref<8x128xf32, #tpu.memory_space<vmem>>, vector<8x128xf32>
    tpu.vector_store %arg5[%c0_6, %c0_7], %11 {strides = array<i32>} : memref<8x128xf32, #tpu.memory_space<vmem>>, vector<8x128xf32>,
    %c0_8 = arith.constant 0 : index
    %c0_9 = arith.constant 0 : index
    %13 = vector.load %arg6[%c0_8, %c0_9] : memref<8x128xf32, #tpu.memory_space<vmem>>, vector<8x128xf32>
    %14 = vector.extract_strided_slice %6 {offsets = [0, 0], sizes = [8, 128], strides = [1, 1]} : vector<8x256xf32> to vector<8x128xf32>
    %15 = vector.extract_strided_slice %6 {offsets = [0, 128], sizes = [8, 128], strides = [1, 1]} : vector<8x256xf32> to vector<8x128xf32>
    %16 = arith.addf %14, %15 : vector<8x128xf32>
    %17 = arith.addf %13, %16 : vector<8x128xf32>
    %c0_10 = arith.constant 0 : index
    %c0_11 = arith.constant 0 : index
    %18 = vector.load %arg6[%c0_10, %c0_11] : memref<8x128xf32, #tpu.memory_space<vmem>>, vector<8x128xf32>
    tpu.vector_store %arg6[%c0_10, %c0_11], %17 {strides = array<i32>} : memref<8x128xf32, #tpu.memory_space<vmem>>, vector<8x128xf32>,
    %c0_i32_12 = arith.constant 0 : i32
    %19 = arith.cmpi eq, %arg1, %c0_i32_12 : i32
    %20 = arith.extui %19 : i1 to i32
    %c0_i32_13 = arith.constant 0 : i32
    %21 = arith.cmpi ne, %20, %c0_i32_13 : i32
    scf.if %21 {
      %c0_14 = arith.constant 0 : index
      %c0_15 = arith.constant 0 : index
      %22 = vector.load %arg5[%c0_14, %c0_15] : memref<8x128xf32, #tpu.memory_space<vmem>>, vector<8x128xf32>
      %cst = arith.constant dense<0.000000e+00> : vector<8xf32>
      %23 = vector.multi_reduction <add>, %22, %cst [1] : vector<8x128xf32> to vector<8xf32>
      %24 = vector.shape_cast %23 : vector<8xf32> to vector<8x1xf32>
      %c0_16 = arith.constant 0 : index
      %c0_17 = arith.constant 0 : index
      %25 = vector.load %arg6[%c0_16, %c0_17] : memref<8x128xf32, #tpu.memory_space<vmem>>, vector<8x128xf32>
      %cst_18 = arith.constant dense<0.000000e+00> : vector<8xf32>
      %26 = vector.multi_reduction <add>, %25, %cst_18 [1] : vector<8x128xf32> to vector<8xf32>
      %27 = vector.shape_cast %26 : vector<8xf32> to vector<8x1xf32>
      %cst_19 = arith.constant 2.000000e+00 : f32
      %28 = vector.broadcast %cst_19 : f32 to vector<8x1xf32>
      %29 = arith.mulf %28, %24 : vector<8x1xf32>
      %cst_20 = arith.constant 1.000000e+00 : f32
      %30 = vector.broadcast %cst_20 : f32 to vector<8x1xf32>
      %31 = arith.addf %29, %30 : vector<8x1xf32>
      %cst_21 = arith.constant 1.000000e+00 : f32
      %32 = vector.broadcast %cst_21 : f32 to vector<8x1xf32>
      %33 = arith.addf %27, %32 : vector<8x1xf32>
      %34 = arith.divf %31, %33 : vector<8x1xf32>
      %c0_22 = arith.constant 0 : index
      %c0_23 = arith.constant 0 : index
      %35 = vector.load %arg4[%c0_22, %c0_23] : memref<8x1xf32, #tpu.memory_space<vmem>>, vector<8x1xf32>
      tpu.vector_store %arg4[%c0_22, %c0_23], %34 {strides = array<i32>} : memref<8x1xf32, #tpu.memory_space<vmem>>, vector<8x1xf32>,
    } else {
    }
    return
  }
  func.func @transform_0(%arg0: i32, %arg1: i32) -> (i32, i32) {
    %c0_i32 = arith.constant 0 : i32
    return %arg0, %arg1 : i32, i32
  }
  func.func @transform_1(%arg0: i32, %arg1: i32) -> (i32, i32) {
    %c0_i32 = arith.constant 0 : i32
    return %arg0, %arg1 : i32, i32
  }
  func.func @transform_2(%arg0: i32, %arg1: i32) -> (i32, i32) {
    %c0_i32 = arith.constant 0 : i32
    %c0_i32_0 = arith.constant 0 : i32
    return %arg0, %c0_i32 : i32, i32
  }
}

</mosaic_0001>

<llo_original>
// kernel: tpu_custom_call.1
$region0: #{tpu_custom_call.1}
  #allocation0 [shape = 'u32[]', space=smem, size = 0x4, offset = 0x4, fixed_abs, tag = 'smem constant byte address 0x4 - core index']
  #allocation1 [shape = 'u32[144,128]{1,0:T(1,128)}', space=vmem, size = 0x12000, scoped, tag = 'internal scratch']
  #allocation2 [shape = 'f32[8,128]{1,0:T(8,128)}', space=vmem, size = 0x1000, scoped, tag = 'scratch operand']
  #allocation3 [shape = 'f32[8,128]{1,0:T(8,128)}', space=vmem, size = 0x1000, scoped, tag = 'scratch operand']
  %s0 = inlined_call_operand.hbm [shape: f32[8,256], index: 0, kind: input, shape index: {}]
  %s1 = inlined_call_operand.hbm [shape: f32[8,256], index: 1, kind: input, shape index: {}]
  %s2 = inlined_call_operand.vmem [shape: f32[8,1], index: 2, kind: output, shape index: {}]
  %s3 = sld [smem:[#allocation0]]
  $region34: #{tpu_custom_call.1} parent=0
    _
  %s5 = ssub.s32 1, %s3
  %s6 = scalar_select 0, %s5, %s3
  $region1: #{tpu_custom_call.1} parent=0
    #allocation4 [shape = 'u8[8192]{0}', space=vmem, size = 0x2000, scoped, tag = 'input window, operand 0, single buffered']
    #allocation5 [shape = 's32[1]{0}', space=sflag, size = 0x4, scoped, tag = 'scoped memory for tpu_custom_call.1']
    #allocation6 [shape = 'u8[8192]{0}', space=vmem, size = 0x2000, scoped, tag = 'input window, operand 1, single buffered']
    #allocation7 [shape = 's32[1]{0}', space=sflag, size = 0x4, scoped, tag = 'scoped memory for tpu_custom_call.1']
    %7 = vsyncpa [#allocation5], 0
    %8 = vsyncpa [#allocation7], 0
    // Predicated region
    $region2: #{tpu_custom_call.1} parent=1 // pred_check
      _
    $region3: #{tpu_custom_call.1} parent=1 // pred_check_branch
      %10 = sbr.rel (0) target = $region5
    $region4: #{tpu_custom_call.1} parent=1 // pred_region
      %s12 = ssub.s32 256, 256
      %13 = vsyncadd [#allocation5], %s12
      %s15 = sshll.u32 [#allocation4], 4
      %s16 = int_to_ptr.vmem [resolvable:$true] %s15
      %18 = dma.hbm_to_vmem [thread:$0]  %s0, 256, %s16, [#allocation5]
    $region5: #{tpu_custom_call.1} parent=1 // pred_fallthru
      _
    // Predicated region
    $region6: #{tpu_custom_call.1} parent=1 // pred_check
      _
    $region7: #{tpu_custom_call.1} parent=1 // pred_check_branch
      %20 = sbr.rel (0) target = $region9
    $region8: #{tpu_custom_call.1} parent=1 // pred_region
      %s22 = ssub.s32 256, 256
      %23 = vsyncadd [#allocation7], %s22
      %s25 = sshll.u32 [#allocation6], 4
      %s26 = int_to_ptr.vmem [resolvable:$true] %s25
      %28 = dma.hbm_to_vmem [thread:$0]  %s1, 256, %s26, [#allocation7]
    $region9: #{tpu_custom_call.1} parent=1 // pred_fallthru
      _
    // Predicated region
    $region10: #{tpu_custom_call.1} parent=1 // pred_check
      _
    $region11: #{tpu_custom_call.1} parent=1 // pred_check_branch
      %30 = sbr.rel (0) target = $region13
    $region12: #{tpu_custom_call.1} parent=1 // pred_region
      %31 = dma.done [#allocation5], 256
    $region13: #{tpu_custom_call.1} parent=1 // pred_fallthru
      _
    // Predicated region
    $region14: #{tpu_custom_call.1} parent=1 // pred_check
      _
    $region15: #{tpu_custom_call.1} parent=1 // pred_check_branch
      %33 = sbr.rel (0) target = $region17
    $region16: #{tpu_custom_call.1} parent=1 // pred_region
      %34 = dma.done [#allocation7], 256
    $region17: #{tpu_custom_call.1} parent=1 // pred_fallthru
      _
    %p35 = scmp.eq.s32.totalorder 0, 0
    // Predicated region
    $region18: #{tpu_custom_call.1} parent=1 // pred_check
      %p36 = pneg %p35
    $region19: #{tpu_custom_call.1} parent=1 // pred_check_branch
      %38 = sbr.rel (%p36) target = $region21
    $region20: #{tpu_custom_call.1} parent=1 // pred_region
      %39 = vst [vmem:[#allocation2] sm:$0xff] 0.0
      %40 = vst [vmem:[#allocation3] sm:$0xff] 0.0
    $region21: #{tpu_custom_call.1} parent=1 // pred_fallthru
      _
    %v41 = vld [vmem:[#allocation4] sm:$0xff]
    %v42 = vld [vmem:[#allocation4 + $0x8] sm:$0xff]
    %v43 = vld [vmem:[#allocation6] sm:$0xff]
    %v44 = vld [vmem:[#allocation6 + $0x8] sm:$0xff]
    %v45 = vmul.f32 %v41, %v43
    %v46 = vmul.f32 %v42, %v44
    %v47 = vadd.f32 %v41, %v43
    %v48 = vadd.f32 %v42, %v44
    %v49 = vld [vmem:[#allocation2] sm:$0xff]
    %v50 = vadd.f32 %v45, %v46
    %v51 = vadd.f32 %v49, %v50
    %52 = vst [vmem:[#allocation2] sm:$0xff] %v51
    %v53 = vld [vmem:[#allocation3] sm:$0xff]
    %v54 = vadd.f32 %v47, %v48
    %v55 = vadd.f32 %v53, %v54
    %56 = vst [vmem:[#allocation3] sm:$0xff] %v55
    // Predicated region
    $region22: #{tpu_custom_call.1} parent=1 // pred_check
      %p57 = pneg %p35
    $region23: #{tpu_custom_call.1} parent=1 // pred_check_branch
      %59 = sbr.rel (%p57) target = $region25
    $region24: #{tpu_custom_call.1} parent=1 // pred_region
      %v60 = vld [vmem:[#allocation2] sm:$0xff]
      %61 = vadd.xlane.f32.xlu0 %v60
      %v62 = vpop.xlane.xlu0 %61
      %v63 = vld [vmem:[#allocation3] sm:$0xff]
      %64 = vadd.xlane.f32.xlu0 %v63
      %v65 = vpop.xlane.xlu0 %64
      %v66 = vmul.f32 %v62, 2.0
      %v67 = vadd.f32 %v66, 1.0
      %v68 = vadd.f32 %v65, 1.0
      %v69 = vrcp.pop %v68
      %v70 = vmul.f32 %v67, %v69
      %vm71 = vcmask 7168
      %72 = vst.msk [vmem:[%s2] sm:$0xff] %vm71, %v70
    $region25: #{tpu_custom_call.1} parent=1 // pred_fallthru
      _
    // Predicated region
    $region26: #{tpu_custom_call.1} parent=1 // pred_check
      _
    $region27: #{tpu_custom_call.1} parent=1 // pred_check_branch
      %74 = sbr.rel (0) target = $region29
    $region28: #{tpu_custom_call.1} parent=1 // pred_region
      _
    $region29: #{tpu_custom_call.1} parent=1 // pred_fallthru
      _
    // Predicated region
    $region30: #{tpu_custom_call.1} parent=1 // pred_check
      _
    $region31: #{tpu_custom_call.1} parent=1 // pred_check_branch
      %76 = sbr.rel (0) target = $region33
    $region32: #{tpu_custom_call.1} parent=1 // pred_region
      _
    $region33: #{tpu_custom_call.1} parent=1 // pred_fallthru
      _
    %77 = vsyncpa [#allocation5], 1
    %78 = vsyncpa [#allocation7], 1

</llo_original>
